<compile_context>
chip_gen: v7x
topology: tpu7x:2x2x1
jax: 0.10.0
libtpu: 0.0.40
codegen_flags: <defaults>
</compile_context>

<pallas_src>
import functools
import math

import jax
import jax.numpy as jnp
import numpy as np
from jax.experimental import pallas as pl
from jax.experimental.pallas import tpu as pltpu


# ----------------------------------------------------------------------- small helpers

def _pick_tile(dim, target, multiple):
    """Largest divisor of `dim` that is <= target and a multiple of `multiple`;
    falls back to the full dim (full-extent blocks are always legal)."""
    for t in range(min(target, dim), 0, -1):
        if dim % t == 0 and t % multiple == 0:
            return t
    return dim


def _isize(dt):
    return np.dtype(dt).itemsize


def _vmem_limit(block_bytes, scratch_bytes):
    """Explicit scoped-VMEM budget: double-buffered blocks + scratch, with headroom,
    capped at v7x's 64 MiB physical VMEM."""
    needed = 2 * block_bytes + scratch_bytes
    return int(min(max(2 * needed, 32 << 20), 64 << 20))


# ----------------------------------------------------------------------------- kernels

def _dq_linear_kernel(x_ref, qw_ref, s_ref, z_ref, b_ref, o_ref, acc_ref,
                      *, group_size, matmul_dtype):
    """One (tm, tn, tk) tile of   y = x @ dequant(W)^T + b.

    x_ref:  (tm, tk) matmul_dtype (activations, already cast at the wrapper)
    qw_ref: (tk, tn) int8         (K-major weight tile)
    s_ref:  (G,  tn) f32          (FULL per-group scales column block)
    z_ref:  (G,  tn) f32          (FULL per-group zero points column block)
    b_ref:  (1,  tn) f32
    o_ref:  (tm, tn) out dtype
    acc_ref:(tm, tn) f32 VMEM scratch (resident across the K grid axis)
    """
    k_step = pl.program_id(2)

    @pl.when(k_step == 0)
    def _():
        acc_ref[...] = jnp.zeros_like(acc_ref)

    tk, tn = qw_ref.shape
    gt = tk // group_size  # groups inside this K tile (static)

    # Slice the gt group rows belonging to this K tile out of the full (G, tn) block.
    start = pl.multiple_of(k_step * gt, gt)
    s = s_ref[pl.ds(start, gt), :]
    z = z_ref[pl.ds(start, gt), :]

    # Whole-tile dequant in f32 (VPU), single cast, single MXU matmul per K tile.
    qw = qw_ref[...].astype(jnp.float32).reshape(gt, group_size, tn)
    w = ((qw - z.reshape(gt, 1, tn)) * s.reshape(gt, 1, tn)).reshape(tk, tn)

    acc_ref[...] += jnp.dot(x_ref[...],
                            w.astype(matmul_dtype),
                            preferred_element_type=jnp.float32)

    @pl.when(k_step == pl.num_programs(2) - 1)
    def _():
        # Bias added exactly once, on the final K step; lane-dense store over N.
        o_ref[...] = (acc_ref[...] + b_ref[...]).astype(o_ref.dtype)


def _attn_kernel(q_ref, k_ref, v_ref, o_ref, w_ref, o_acc,
                 *, num_heads, matmul_dtype):
    """One (batch, query-tile) block of multi-head attention.

    q_ref: (1, tq, E)   k_ref/v_ref: (1, S, E)   (head h = lane slice [h*Dh:(h+1)*Dh])
    o_ref: (1, tq, E)   w_ref: (1, H, tq, S)     o_acc: (tq, E) f32 VMEM scratch
    1/sqrt(Dh) is already folded into the q projection parameters.
    """
    E = q_ref.shape[2]
    Dh = E // num_heads

    q = q_ref[0]
    k = k_ref[0]
    v = v_ref[0]

    for h in range(num_heads):
        lo = h * Dh
        qh = q[:, lo:lo + Dh].astype(matmul_dtype)
        kh = k[:, lo:lo + Dh].astype(matmul_dtype)
        vh = v[:, lo:lo + Dh].astype(matmul_dtype)

        # scores = qh @ kh^T (contraction on Dh, no transpose materialized)
        s = jax.lax.dot_general(qh, kh, (((1,), (1,)), ((), ())),
                                preferred_element_type=jnp.float32)      # (tq, S)
        m = jnp.max(s, axis=-1, keepdims=True)
        p = jnp.exp(s - m)
        l = jnp.sum(p, axis=-1, keepdims=True)
        attn = p * pl.reciprocal(l, approx=True)                          # EUP, not VALU
        w_ref[0, h] = attn.astype(w_ref.dtype)                            # lane-dense on S
        o_acc[:, lo:lo + Dh] = jnp.dot(attn.astype(matmul_dtype), vh,
                                       preferred_element_type=jnp.float32)

    # One lane-dense (tq, E) store, already in the (B, S, H*Dh) layout out_proj needs.
    o_ref[0] = o_acc[...].astype(o_ref.dtype)


# ----------------------------------------------------------------------------- wrappers

def dequant_linear(x, qweight_t, scales_t, zeros_t, bias, group_size,
                   *, tm=512, tn=256, tk=512,
                   matmul_dtype=jnp.bfloat16, out_dtype=jnp.float32):
    """x: (M, K); qweight_t: (K, N) int8; scales_t/zeros_t: (G, N) f32; bias: (N,)."""
    M, K = x.shape
    N = qweight_t.shape[1]
    G = scales_t.shape[0]

    tm = _pick_tile(M, tm, 8)
    tn = _pick_tile(N, tn, 128)
    # K tile: whole number of quant groups AND lane-aligned (multiple of 128) when tiled.
    tk = _pick_tile(K, tk, math.lcm(128, group_size))
    gt = tk // group_size

    x = x.astype(matmul_dtype)          # halve HBM re-reads (x is re-read per N tile)
    bias2d = bias.astype(jnp.float32).reshape(1, N)

    block_bytes = (tm * tk * _isize(matmul_dtype)        # x
                   + tk * tn * 1                         # qweight
                   + 2 * G * tn * 4                      # scales + zeros (full G)
                   + tn * 4                              # bias
                   + tm * tn * _isize(out_dtype))        # output
    scratch_bytes = tm * tn * 4

    kern = functools.partial(_dq_linear_kernel, group_size=group_size,
                             matmul_dtype=matmul_dtype)
    return pl.pallas_call(
        kern,
        out_shape=jax.ShapeDtypeStruct((M, N), out_dtype),
        grid=(M // tm, N // tn, K // tk),
        in_specs=[
            pl.BlockSpec((tm, tk), lambda i, j, k: (i, k)),
            pl.BlockSpec((tk, tn), lambda i, j, k: (k, j)),
            pl.BlockSpec((G, tn), lambda i, j, k: (0, j)),   # full G: sliced in-kernel
            pl.BlockSpec((G, tn), lambda i, j, k: (0, j)),
            pl.BlockSpec((1, tn), lambda i, j, k: (0, j)),
        ],
        out_specs=pl.BlockSpec((tm, tn), lambda i, j, k: (i, j)),
        scratch_shapes=[pltpu.VMEM((tm, tn), jnp.float32)],
        compiler_params=pltpu.CompilerParams(
            dimension_semantics=("parallel", "parallel", "arbitrary"),
            vmem_limit_bytes=_vmem_limit(block_bytes, scratch_bytes)),
    )(x, qweight_t, scales_t, zeros_t, bias2d)


def mha_core(q, k, v, num_heads, *, tq=256,
             matmul_dtype=jnp.bfloat16, weights_dtype=jnp.float32):
    """q, k, v: (B, S, E) -> (attn_out (B, S, E) in q.dtype, attn_weights (B,H,S,S))."""
    B, S, E = q.shape
    H = num_heads
    tq = _pick_tile(S, tq, 8)

    block_bytes = (tq * E * _isize(q.dtype)               # q block
                   + 2 * S * E * _isize(k.dtype)          # resident k, v
                   + tq * E * _isize(q.dtype)             # output block
                   + H * tq * S * _isize(weights_dtype))  # attn_weights block
    scratch_bytes = tq * E * 4

    kern = functools.partial(_attn_kernel, num_heads=H, matmul_dtype=matmul_dtype)
    return pl.pallas_call(
        kern,
        out_shape=(jax.ShapeDtypeStruct((B, S, E), q.dtype),
                   jax.ShapeDtypeStruct((B, H, S, S), weights_dtype)),
        grid=(B, S // tq),
        in_specs=[pl.BlockSpec((1, tq, E), lambda b, qi: (b, qi, 0)),
                  pl.BlockSpec((1, S, E), lambda b, qi: (b, 0, 0)),
                  pl.BlockSpec((1, S, E), lambda b, qi: (b, 0, 0))],
        out_specs=(pl.BlockSpec((1, tq, E), lambda b, qi: (b, qi, 0)),
                   pl.BlockSpec((1, H, tq, S), lambda b, qi: (b, 0, qi, 0))),
        scratch_shapes=[pltpu.VMEM((tq, E), jnp.float32)],
        compiler_params=pltpu.CompilerParams(
            dimension_semantics=("parallel", "parallel"),
            vmem_limit_bytes=_vmem_limit(block_bytes, scratch_bytes)),
    )(q, k, v)


# -------------------------------------------------------------- parameter construction

def quantize_linear_params(weight, bias, channel_scales, w_bit, group_size,
                           output_scale=1.0):
    """Replicates QuantizedLinear.quantize_and_store (host-side numpy, deterministic).

    Returns kernel-friendly layouts: qweight (K, N) int8, scales/zeros (G, N) f32, bias.
    `output_scale` is folded into scales and bias (used to absorb 1/sqrt(head_dim)).
    """
    weight = np.asarray(weight, dtype=np.float32)
    out_f, in_f = weight.shape
    scaled = weight * channel_scales[:, None]
    gw = scaled.reshape(-1, group_size)
    max_v = gw.max(axis=1, keepdims=True)
    min_v = gw.min(axis=1, keepdims=True)
    max_int = 2 ** w_bit - 1
    scales = np.clip(max_v - min_v, 1e-6, None) / max_int
    zeros = np.clip(-np.round(min_v / scales), 0, max_int)
    wq = np.clip(np.round(gw / scales) + zeros, 0, max_int)
    # Stored as int8: 8-bit unsigned values >127 wrap, exactly like the torch buffer's
    # .to(torch.int8) followed by qweight.to(float) in _dequantize_weights.
    qweight = wq.reshape(out_f, in_f).astype(np.int8)
    scales = scales.reshape(out_f, in_f // group_size)
    zeros = zeros.reshape(out_f, in_f // group_size)
    adjusted_scales = scales / channel_scales[:, None]
    # float16 storage round-trip (torch buffers), then fold the output scale at f32.
    adjusted_scales = adjusted_scales.astype(np.float16).astype(np.float32) * output_scale
    zeros = zeros.astype(np.float16).astype(np.float32)
    bias = np.asarray(bias, dtype=np.float32) * output_scale
    # Pre-transpose for the kernel: K on sublanes, N on lanes.
    return (jnp.asarray(np.ascontiguousarray(qweight.T)),
            jnp.asarray(np.ascontiguousarray(adjusted_scales.T)),
            jnp.asarray(np.ascontiguousarray(zeros.T)),
            jnp.asarray(bias))


def build_quantized_attention(key, embed_dim, num_heads,
                              q_cfg, k_cfg, v_cfg, out_cfg, base_scale=1000.0):
    """Deterministic float weights, quantized per the module's 'concentrated' config."""
    keys = jax.random.split(key, 8)
    def mk_w(k): return 0.02 * jax.random.normal(k, (embed_dim, embed_dim), jnp.float32)
    def mk_b(k): return 0.01 * jax.random.normal(k, (embed_dim,), jnp.float32)

    w_q, w_k, w_v, w_o = mk_w(keys[0]), mk_w(keys[1]), mk_w(keys[2]), mk_w(keys[3])
    b_q, b_k, b_v, b_o = mk_b(keys[4]), mk_b(keys[5]), mk_b(keys[6]), mk_b(keys[7])

    # _identify_critical_channels (calibration-free branches of the module)
    cs_q = np.full((embed_dim,), base_scale, np.float32)            # query
    cs_k = np.full((embed_dim,), base_scale, np.float32)            # key
    cs_v = np.full((embed_dim,), base_scale / 5.0, np.float32)      # value
    w_o_np = np.asarray(w_o)
    norms = np.abs(w_o_np).mean(axis=1)
    thresh = np.quantile(norms, 0.2)
    cs_o = np.full((embed_dim,), base_scale / 10.0, np.float32)     # output
    cs_o[norms < thresh] = base_scale / 5.0

    head_dim = embed_dim // num_heads
    softmax_scale = 1.0 / math.sqrt(head_dim)   # folded into the q projection

    params = {
        "q": quantize_linear_params(w_q, b_q, cs_q, q_cfg["bits"], q_cfg["group_size"],
                                    output_scale=softmax_scale),
        "k": quantize_linear_params(w_k, b_k, cs_k, k_cfg["bits"], k_cfg["group_size"]),
        "v": quantize_linear_params(w_v, b_v, cs_v, v_cfg["bits"], v_cfg["group_size"]),
        "out": quantize_linear_params(w_o, b_o, cs_o, out_cfg["bits"], out_cfg["group_size"]),
    }
    gsizes = {"q": q_cfg["group_size"], "k": k_cfg["group_size"],
              "v": v_cfg["group_size"], "out": out_cfg["group_size"]}
    return params, gsizes


def quantized_attention_forward(hidden_states, params, gsizes, num_heads,
                                matmul_dtype=jnp.bfloat16,
                                weights_dtype=jnp.float32):
    """Pallas implementation of QuantizedAttention.forward -> (output, attn_weights)."""
    B, S, E = hidden_states.shape
    xf = hidden_states.reshape(B * S, E)

    def proj(name):
        qw_t, sc_t, zr_t, b = params[name]
        # Intermediate activations in matmul_dtype (bf16): halves HBM traffic into
        # the attention kernel, and the MXU operands are bf16 anyway.
        return dequant_linear(xf, qw_t, sc_t, zr_t, b, gsizes[name],
                              matmul_dtype=matmul_dtype, out_dtype=matmul_dtype)

    # (B*S, E) -> (B, S, E) reshapes are layout no-ops; heads are handled inside the
    # attention kernel as lane slices, so no (B,S,H,Dh)<->(B,H,S,Dh) transposes hit HBM.
    query = proj("q").reshape(B, S, E)
    key = proj("k").reshape(B, S, E)
    value = proj("v").reshape(B, S, E)

    attn_out, attn_w = mha_core(query, key, value, num_heads,
                                matmul_dtype=matmul_dtype, weights_dtype=weights_dtype)

    qw_t, sc_t, zr_t, b = params["out"]
    output = dequant_linear(attn_out.reshape(B * S, E), qw_t, sc_t, zr_t, b,
                            gsizes["out"], matmul_dtype=matmul_dtype,
                            out_dtype=jnp.float32).reshape(B, S, E)
    return output, attn_w


# ----------------------------------------------------------------------------- main

if __name__ == "__main__":
    # Small shapes consistent with the module: embed_dim divisible by num_heads,
    # group sizes divide embed_dim (the real config uses 64/128 at embed_dim=768).
    batch, seq, embed_dim, num_heads = 2, 8, 32, 4

    # "concentrated" quant_config, scaled down to the small embed_dim
    q_cfg = {"bits": 8, "group_size": 8}
    k_cfg = {"bits": 8, "group_size": 8}
    v_cfg = {"bits": 6, "group_size": 16}
    out_cfg = {"bits": 4, "group_size": 16}

    # bf16 MXU operands (native rate on v5e/v6e/v7x); all accumulation stays f32.
    MATMUL_DTYPE = jnp.bfloat16
    # attn_weights kept f32 for parity; flip to jnp.bfloat16 at real S to halve the
    # dominant (B,H,S,S) HBM write.
    WEIGHTS_DTYPE = jnp.float32

    root = jax.random.PRNGKey(0)
    k_params, k_input = jax.random.split(root)
    params, gsizes = build_quantized_attention(
        k_params, embed_dim, num_heads, q_cfg, k_cfg, v_cfg, out_cfg, base_scale=1000.0)

    hidden_states = jax.random.normal(k_input, (batch, seq, embed_dim), jnp.float32)

    output, attn_weights = quantized_attention_forward(
        hidden_states, params, gsizes, num_heads,
        matmul_dtype=MATMUL_DTYPE, weights_dtype=WEIGHTS_DTYPE)
    jax.block_until_ready((output, attn_weights))

    assert output.shape == (batch, seq, embed_dim)
    assert attn_weights.shape == (batch, num_heads, seq, seq)
    # softmax rows sum to ~1 (approx-reciprocal normalization => ~1e-3 relative error)
    row_sums = np.asarray(attn_weights, dtype=np.float32).sum(-1)
    assert np.allclose(row_sums, 1.0, atol=5e-3)
    assert np.isfinite(np.asarray(output, dtype=np.float32)).all()

    print("KERNEL_OK")
</pallas_src>

<mosaic_0001>
module attributes {stable_mosaic.version = 11 : i64} {
  func.func @_dq_linear_kernel(%arg0: i32, %arg1: i32, %arg2: i32, %arg3: memref<16x32xbf16, #tpu.memory_space<vmem>>, %arg4: memref<32x32xi8, #tpu.memory_space<vmem>>, %arg5: memref<4x32xf32, #tpu.memory_space<vmem>>, %arg6: memref<4x32xf32, #tpu.memory_space<vmem>>, %arg7: memref<1x32xf32, #tpu.memory_space<vmem>>, %arg8: memref<16x32xbf16, #tpu.memory_space<vmem>>, %arg9: memref<16x32xf32, #tpu.memory_space<vmem>>) attributes {dimension_semantics = [#tpu.dimension_semantics<parallel>, #tpu.dimension_semantics<parallel>, #tpu.dimension_semantics<arbitrary>], iteration_bounds = array<i64: 1, 1, 1>, scalar_prefetch = 0 : i64, scratch_operands = 1 : i64, tpu.core_type = #tpu.core_type<tc>, window_params = [{transform_indices = @transform_0, window_bounds = array<i64: 16, 32>}, {transform_indices = @transform_1, window_bounds = array<i64: 32, 32>}, {transform_indices = @transform_2, window_bounds = array<i64: 4, 32>}, {transform_indices = @transform_3, window_bounds = array<i64: 4, 32>}, {transform_indices = @transform_4, window_bounds = array<i64: 1, 32>}, {transform_indices = @transform_5, window_bounds = array<i64: 16, 32>}]} {
    %c0_i32 = arith.constant 0 : i32
    %0 = arith.cmpi eq, %arg2, %c0_i32 : i32
    %1 = arith.extui %0 : i1 to i32
    %c0_i32_0 = arith.constant 0 : i32
    %2 = arith.cmpi ne, %1, %c0_i32_0 : i32
    scf.if %2 {
      %cst_12 = arith.constant 0.000000e+00 : f32
      %28 = vector.broadcast %cst_12 : f32 to vector<16x32xf32>
      %c0_13 = arith.constant 0 : index
      %c0_14 = arith.constant 0 : index
      %29 = vector.load %arg9[%c0_13, %c0_14] : memref<16x32xf32, #tpu.memory_space<vmem>>, vector<16x32xf32>
      tpu.vector_store %arg9[%c0_13, %c0_14], %28 {strides = array<i32>} : memref<16x32xf32, #tpu.memory_space<vmem>>, vector<16x32xf32>,
    } else {
    }
    %c4_i32 = arith.constant 4 : i32
    %3 = arith.muli %arg2, %c4_i32 : i32
    %4 = tpu.assume_multiple %3, 4 : i32
    %5 = arith.index_cast %4 : i32 to index
    %c0 = arith.constant 0 : index
    %6 = vector.load %arg5[%5, %c0] : memref<4x32xf32, #tpu.memory_space<vmem>>, vector<4x32xf32>
    %7 = arith.index_cast %4 : i32 to index
    %c0_1 = arith.constant 0 : index
    %8 = vector.load %arg6[%7, %c0_1] : memref<4x32xf32, #tpu.memory_space<vmem>>, vector<4x32xf32>
    %c0_2 = arith.constant 0 : index
    %c0_3 = arith.constant 0 : index
    %9 = vector.load %arg4[%c0_2, %c0_3] : memref<32x32xi8, #tpu.memory_space<vmem>>, vector<32x32xi8>
    %10 = arith.sitofp %9 : vector<32x32xi8> to vector<32x32xf32>
    %11 = vector.shape_cast %10 : vector<32x32xf32> to vector<4x8x32xf32>
    %12 = vector.shape_cast %8 : vector<4x32xf32> to vector<4x1x32xf32>
    %13 = vector.broadcast %12 : vector<4x1x32xf32> to vector<4x8x32xf32>
    %14 = arith.subf %11, %13 : vector<4x8x32xf32>
    %15 = vector.shape_cast %6 : vector<4x32xf32> to vector<4x1x32xf32>
    %16 = vector.broadcast %15 : vector<4x1x32xf32> to vector<4x8x32xf32>
    %17 = arith.mulf %14, %16 : vector<4x8x32xf32>
    %18 = vector.shape_cast %17 : vector<4x8x32xf32> to vector<32x32xf32>
    %c0_4 = arith.constant 0 : index
    %c0_5 = arith.constant 0 : index
    %19 = vector.load %arg9[%c0_4, %c0_5] : memref<16x32xf32, #tpu.memory_space<vmem>>, vector<16x32xf32>
    %c0_6 = arith.constant 0 : index
    %c0_7 = arith.constant 0 : index
    %20 = vector.load %arg3[%c0_6, %c0_7] : memref<16x32xbf16, #tpu.memory_space<vmem>>, vector<16x32xbf16>
    %21 = arith.truncf %18 : vector<32x32xf32> to vector<32x32xbf16>
    %cst = arith.constant dense<0.000000e+00> : vector<16x32xf32>
    %22 = tpu.matmul %20, %21, %cst {dimension_numbers = #tpu.dot_dimension_numbers<[1], [0], [0], [1], [0, 0, 1, 1], [], []>} : vector<16x32xbf16>, vector<32x32xbf16>, vector<16x32xf32> -> vector<16x32xf32>
    %23 = arith.addf %19, %22 : vector<16x32xf32>
    %c0_8 = arith.constant 0 : index
    %c0_9 = arith.constant 0 : index
    %24 = vector.load %arg9[%c0_8, %c0_9] : memref<16x32xf32, #tpu.memory_space<vmem>>, vector<16x32xf32>
    tpu.vector_store %arg9[%c0_8, %c0_9], %23 {strides = array<i32>} : memref<16x32xf32, #tpu.memory_space<vmem>>, vector<16x32xf32>,
    %c0_i32_10 = arith.constant 0 : i32
    %25 = arith.cmpi eq, %arg2, %c0_i32_10 : i32
    %26 = arith.extui %25 : i1 to i32
    %c0_i32_11 = arith.constant 0 : i32
    %27 = arith.cmpi ne, %26, %c0_i32_11 : i32
    scf.if %27 {
      %c0_12 = arith.constant 0 : index
      %c0_13 = arith.constant 0 : index
      %28 = vector.load %arg9[%c0_12, %c0_13] : memref<16x32xf32, #tpu.memory_space<vmem>>, vector<16x32xf32>
      %c0_14 = arith.constant 0 : index
      %c0_15 = arith.constant 0 : index
      %29 = vector.load %arg7[%c0_14, %c0_15] : memref<1x32xf32, #tpu.memory_space<vmem>>, vector<1x32xf32>
      %30 = vector.broadcast %29 : vector<1x32xf32> to vector<16x32xf32>
      %31 = arith.addf %28, %30 : vector<16x32xf32>
      %32 = arith.truncf %31 : vector<16x32xf32> to vector<16x32xbf16>
      %c0_16 = arith.constant 0 : index
      %c0_17 = arith.constant 0 : index
      %33 = vector.load %arg8[%c0_16, %c0_17] : memref<16x32xbf16, #tpu.memory_space<vmem>>, vector<16x32xbf16>
      tpu.vector_store %arg8[%c0_16, %c0_17], %32 {strides = array<i32>} : memref<16x32xbf16, #tpu.memory_space<vmem>>, vector<16x32xbf16>,
    } else {
    }
    return
  }
  func.func @transform_0(%arg0: i32, %arg1: i32, %arg2: i32) -> (i32, i32) {
    %c0_i32 = arith.constant 0 : i32
    return %arg0, %arg2 : i32, i32
  }
  func.func @transform_1(%arg0: i32, %arg1: i32, %arg2: i32) -> (i32, i32) {
    %c0_i32 = arith.constant 0 : i32
    return %arg2, %arg1 : i32, i32
  }
  func.func @transform_2(%arg0: i32, %arg1: i32, %arg2: i32) -> (i32, i32) {
    %c0_i32 = arith.constant 0 : i32
    %c0_i32_0 = arith.constant 0 : i32
    return %c0_i32, %arg1 : i32, i32
  }
  func.func @transform_3(%arg0: i32, %arg1: i32, %arg2: i32) -> (i32, i32) {
    %c0_i32 = arith.constant 0 : i32
    %c0_i32_0 = arith.constant 0 : i32
    return %c0_i32, %arg1 : i32, i32
  }
  func.func @transform_4(%arg0: i32, %arg1: i32, %arg2: i32) -> (i32, i32) {
    %c0_i32 = arith.constant 0 : i32
    %c0_i32_0 = arith.constant 0 : i32
    return %c0_i32, %arg1 : i32, i32
  }
  func.func @transform_5(%arg0: i32, %arg1: i32, %arg2: i32) -> (i32, i32) {
    %c0_i32 = arith.constant 0 : i32
    return %arg0, %arg1 : i32, i32
  }
}

</mosaic_0001>

<llo_original>
// kernel: tpu_custom_call.1
$region0: #{tpu_custom_call.1}
  #allocation0 [shape = 'u32[]', space=smem, size = 0x4, offset = 0x4, fixed_abs, tag = 'smem constant byte address 0x4 - core index']
  #allocation1 [shape = 'u32[144,128]{1,0:T(1,128)}', space=vmem, size = 0x12000, scoped, tag = 'internal scratch']
  #allocation2 [shape = 'f32[16,32]{1,0:T(8,128)}', space=vmem, size = 0x2000, scoped, tag = 'scratch operand']
  %s0 = inlined_call_operand.hbm [shape: bf16[16,32], index: 0, kind: input, shape index: {}]
  %s1 = inlined_call_operand.hbm [shape: s8[32,32], index: 1, kind: input, shape index: {}]
  %s2 = inlined_call_operand.vmem [shape: f32[4,32], index: 2, kind: input, shape index: {}]
  %s3 = inlined_call_operand.vmem [shape: f32[4,32], index: 3, kind: input, shape index: {}]
  %s4 = inlined_call_operand.vmem [shape: f32[1,32], index: 4, kind: input, shape index: {}]
  %s5 = inlined_call_operand.hbm [shape: bf16[16,32], index: 5, kind: output, shape index: {}]
  %s6 = sld [smem:[#allocation0]]
  $region46: #{tpu_custom_call.1} parent=0
    _
  %s8 = ssub.s32 1, %s6
  %s9 = scalar_select 0, %s8, %s6
  $region1: #{tpu_custom_call.1} parent=0
    #allocation3 [shape = 'u8[4096]{0}', space=vmem, size = 0x1000, scoped, tag = 'input window, operand 0, single buffered']
    #allocation4 [shape = 's32[1]{0}', space=sflag, size = 0x4, scoped, tag = 'scoped memory for tpu_custom_call.1']
    #allocation5 [shape = 's32[1]{0}', space=sflag, size = 0x4, scoped, tag = 'scoped memory for tpu_custom_call.1']
    #allocation6 [shape = 'u8[4096]{0}', space=vmem, size = 0x1000, scoped, tag = 'input window, operand 1, single buffered']
    #allocation7 [shape = 's32[1]{0}', space=sflag, size = 0x4, scoped, tag = 'scoped memory for tpu_custom_call.1']
    #allocation8 [shape = 'u8[4096]{0}', space=vmem, size = 0x1000, scoped, tag = 'output window, operand 0, single buffered']
    %10 = vsyncpa [#allocation4], 0
    %11 = vsyncpa [#allocation7], 0
    %12 = vsyncpa [#allocation5], 0
    // Predicated region
    $region2: #{tpu_custom_call.1} parent=1 // pred_check
      _
    $region3: #{tpu_custom_call.1} parent=1 // pred_check_branch
      %14 = sbr.rel (0) target = $region5
    $region4: #{tpu_custom_call.1} parent=1 // pred_region
      %s16 = ssub.s32 128, 128
      %17 = vsyncadd [#allocation4], %s16
      %s18 = sshll.u32 [#allocation3], 4
      %s19 = int_to_ptr.vmem [resolvable:$true] %s18
      %24 = dma.hbm_to_vmem [thread:$0]  %s0, 128, %s19, [#allocation4], 64, 64, 4
    $region5: #{tpu_custom_call.1} parent=1 // pred_fallthru
      _
    // Predicated region
    $region6: #{tpu_custom_call.1} parent=1 // pred_check
      _
    $region7: #{tpu_custom_call.1} parent=1 // pred_check_branch
      %26 = sbr.rel (0) target = $region9
    $region8: #{tpu_custom_call.1} parent=1 // pred_region
      %s28 = ssub.s32 128, 128
      %29 = vsyncadd [#allocation7], %s28
      %s31 = sshll.u32 [#allocation6], 4
      %s32 = int_to_ptr.vmem [resolvable:$true] %s31
      %34 = dma.hbm_to_vmem [thread:$0]  %s1, 128, %s32, [#allocation7]
    $region9: #{tpu_custom_call.1} parent=1 // pred_fallthru
      _
    // Predicated region
    $region10: #{tpu_custom_call.1} parent=1 // pred_check
      _
    $region11: #{tpu_custom_call.1} parent=1 // pred_check_branch
      %36 = sbr.rel (0) target = $region13
    $region12: #{tpu_custom_call.1} parent=1 // pred_region
      _
    $region13: #{tpu_custom_call.1} parent=1 // pred_fallthru
      _
    // Predicated region
    $region14: #{tpu_custom_call.1} parent=1 // pred_check
      _
    $region15: #{tpu_custom_call.1} parent=1 // pred_check_branch
      %38 = sbr.rel (0) target = $region17
    $region16: #{tpu_custom_call.1} parent=1 // pred_region
      _
    $region17: #{tpu_custom_call.1} parent=1 // pred_fallthru
      _
    // Predicated region
    $region18: #{tpu_custom_call.1} parent=1 // pred_check
      _
    $region19: #{tpu_custom_call.1} parent=1 // pred_check_branch
      %40 = sbr.rel (0) target = $region21
    $region20: #{tpu_custom_call.1} parent=1 // pred_region
      _
    $region21: #{tpu_custom_call.1} parent=1 // pred_fallthru
      _
    // Predicated region
    $region22: #{tpu_custom_call.1} parent=1 // pred_check
      _
    $region23: #{tpu_custom_call.1} parent=1 // pred_check_branch
      %42 = sbr.rel (0) target = $region25
    $region24: #{tpu_custom_call.1} parent=1 // pred_region
      %43 = dma.done [#allocation4], 128
    $region25: #{tpu_custom_call.1} parent=1 // pred_fallthru
      _
    // Predicated region
    $region26: #{tpu_custom_call.1} parent=1 // pred_check
      _
    $region27: #{tpu_custom_call.1} parent=1 // pred_check_branch
      %45 = sbr.rel (0) target = $region29
    $region28: #{tpu_custom_call.1} parent=1 // pred_region
      %46 = dma.done [#allocation7], 128
    $region29: #{tpu_custom_call.1} parent=1 // pred_fallthru
      _
    %p48 = scmp.eq.s32.totalorder 0, 0
    // Predicated region
    $region30: #{tpu_custom_call.1} parent=1 // pred_check
      %p49 = pneg %p48
    $region31: #{tpu_custom_call.1} parent=1 // pred_check_branch
      %51 = sbr.rel (%p49) target = $region33
    $region32: #{tpu_custom_call.1} parent=1 // pred_region
      %vm52 = vcmask 261120
      %53 = vst.msk [vmem:[#allocation2] sm:$0xff] %vm52, 0.0
      %54 = vst.msk [vmem:[#allocation2 + $0x8] sm:$0xff] %vm52, 0.0
    $region33: #{tpu_custom_call.1} parent=1 // pred_fallthru
      _
    %s55 = smul.u32 0, 4
    %s56 = scalar_lea.vmem %s2, %s55
    %v57 = vld [vmem:[%s56] sm:$0xf]
    %s58 = scalar_lea.vmem %s3, %s55
    %v59 = vld [vmem:[%s58] sm:$0xf]
    %v60 = vld [vmem:[#allocation6] sm:$0xff]
    %v61 = vunpack.c.0.s8 %v60
    %v62 = vunpack.c.1.s8 %v60
    %v63 = vunpack.c.2.s8 %v60
    %v64 = vunpack.c.3.s8 %v60
    %v65 = vcvt.s32.f32 %v61
    %v66 = vcvt.s32.f32 %v62
    %v67 = vcvt.s32.f32 %v63
    %v68 = vcvt.s32.f32 %v64
    %v71 = vunpack.c.l.s4 1966171168
    %v72 = vunpack.c.0.s8 %v71
    %v73 = vlaneseq
    %v74 = vshrl.u32 %v73, 7
    %v75 = vsub.s32 %v72, %v74
    %v76 = vrot.slane %v59, %v75
    %v77 = vcombine.high %v76, %v76
    %v79 = vunpack.c.l.s4 1966171168
    %v80 = vunpack.c.0.s8 %v79
    %v81 = vlaneseq
    %v82 = vshrl.u32 %v81, 7
    %v83 = vsub.s32 %v80, %v82
    %v84 = vrot.slane %v76, %v83
    %v86 = vunpack.c.l.s4 1966171168
    %v87 = vunpack.c.0.s8 %v86
    %v88 = vlaneseq
    %v89 = vshrl.u32 %v88, 7
    %v90 = vsub.s32 %v87, %v89
    %v91 = vrot.slane %v77, %v90
    %v92 = vcombine.high %v84, %v84
    %v93 = vcombine.high %v91, %v91
    %v94 = vlaneseq
    %v95 = vshrl.u32 %v94, 7
    %v96 = vsub.s32 0, %v95
    %v97 = vrot.slane %v84, %v96
    %v98 = vlaneseq
    %v99 = vshrl.u32 %v98, 7
    %v100 = vsub.s32 0, %v99
    %v101 = vrot.slane %v91, %v100
    %v102 = vlaneseq
    %v103 = vshrl.u32 %v102, 7
    %v104 = vsub.s32 0, %v103
    %v105 = vrot.slane %v92, %v104
    %v106 = vlaneseq
    %v107 = vshrl.u32 %v106, 7
    %v108 = vsub.s32 0, %v107
    %v109 = vrot.slane %v93, %v108
    %v114 = vsub.f32 %v65, %v97
    %v115 = vsub.f32 %v66, %v101
    %v116 = vsub.f32 %v67, %v105
    %v117 = vsub.f32 %v68, %v109
    %v120 = vunpack.c.l.s4 1966171168
    %v121 = vunpack.c.0.s8 %v120
    %v122 = vlaneseq
    %v123 = vshrl.u32 %v122, 7
    %v124 = vsub.s32 %v121, %v123
    %v125 = vrot.slane %v57, %v124
    %v126 = vcombine.high %v125, %v125
    %v128 = vunpack.c.l.s4 1966171168
    %v129 = vunpack.c.0.s8 %v128
    %v130 = vlaneseq
    %v131 = vshrl.u32 %v130, 7
    %v132 = vsub.s32 %v129, %v131
    %v133 = vrot.slane %v125, %v132
    %v135 = vunpack.c.l.s4 1966171168
    %v136 = vunpack.c.0.s8 %v135
    %v137 = vlaneseq
    %v138 = vshrl.u32 %v137, 7
    %v139 = vsub.s32 %v136, %v138
    %v140 = vrot.slane %v126, %v139
    %v141 = vcombine.high %v133, %v133
    %v142 = vcombine.high %v140, %v140
    %v143 = vlaneseq
    %v144 = vshrl.u32 %v143, 7
    %v145 = vsub.s32 0, %v144
    %v146 = vrot.slane %v133, %v145
    %v147 = vlaneseq
    %v148 = vshrl.u32 %v147, 7
    %v149 = vsub.s32 0, %v148
    %v150 = vrot.slane %v140, %v149
    %v151 = vlaneseq
    %v152 = vshrl.u32 %v151, 7
    %v153 = vsub.s32 0, %v152
    %v154 = vrot.slane %v141, %v153
    %v155 = vlaneseq
    %v156 = vshrl.u32 %v155, 7
    %v157 = vsub.s32 0, %v156
    %v158 = vrot.slane %v142, %v157
    %v163 = vmul.f32 %v114, %v146
    %v164 = vmul.f32 %v115, %v150
    %v165 = vmul.f32 %v116, %v154
    %v166 = vmul.f32 %v117, %v158
    %v167 = vld [vmem:[#allocation2] sm:$0xff]
    %v168 = vld [vmem:[#allocation2 + $0x8] sm:$0xff]
    %v169 = vld [vmem:[#allocation3] sm:$0xf]
    %v170 = vld [vmem:[#allocation3 + $0x4] sm:$0xf]
    %v171 = vpack.c.bf16 %v164, %v163
    %v172 = vpack.c.bf16 %v166, %v165
    %v175 = vunpack.c.l.b16 %v169
    %v176 = vunpack.c.l.b16 %v170
    %v177 = vpack.c.b16 %v176, %v175
    %vm178 = vcmask 261120
    %v180 = vsel %vm178, %v177, 0
    %182 = vmatprep.subr.bf16.mxu0 0
    %183 = vmatpush1.bf16.msra.mxu0 %v171
    %184 = vmatprep.subr.bf16.mxu0 0
    %185 = vmatpush1.bf16.msra.mxu0 %v172
    %186 = vmatprep.subr.bf16.mxu0 0
    %187 = vmatpush1.bf16.msra.mxu0 0
    %188 = vmatprep.subr.bf16.mxu0 0
    %189 = vmatpush1.bf16.msra.mxu0 0
    %190 = vmatprep.subr.bf16.mxu0 0
    %191 = vmatpush1.bf16.msra.mxu0 0
    %192 = vmatprep.subr.bf16.mxu0 0
    %193 = vmatpush1.bf16.msra.mxu0 0
    %194 = vmatprep.subr.bf16.mxu0 0
    %195 = vmatpush1.bf16.msra.mxu0 0
    %196 = vmatprep.subr.bf16.mxu0 0
    %197 = vmatpush1.bf16.msra.mxu0 0
    %198 = vmatprep.subr.bf16.mxu0 0
    %199 = vmatpush1.bf16.msra.mxu0 0
    %200 = vmatprep.subr.bf16.mxu0 0
    %201 = vmatpush1.bf16.msra.mxu0 0
    %202 = vmatprep.subr.bf16.mxu0 0
    %203 = vmatpush1.bf16.msra.mxu0 0
    %204 = vmatprep.subr.bf16.mxu0 0
    %205 = vmatpush1.bf16.msra.mxu0 0
    %206 = vmatprep.subr.bf16.mxu0 0
    %207 = vmatpush1.bf16.msra.mxu0 0
    %208 = vmatprep.subr.bf16.mxu0 0
    %209 = vmatpush1.bf16.msra.mxu0 0
    %210 = vmatprep.subr.bf16.mxu0 0
    %211 = vmatpush1.bf16.msra.mxu0 0
    %212 = vmatprep.subr.bf16.mxu0 0
    %213 = vmatpush1.bf16.msra.mxu0 0
    %214 = vmatprep.mubr.bf16.mxu0 0
    %215 = vmatmul.mubr.bf16.gmra.mrb[0].mxu0 %v180
    %v216 = vpop.f32.mrb[0].mxu0
    %v217 = vadd.f32 0.0, %v216
    %v218 = vpop.f32.mrb[0].mxu0
    %v219 = vpop.f32.mrb[0].mxu0
    %v220 = vadd.f32 0.0, %v219
    %v221 = vpop.f32.mrb[0].mxu0
    %222 = vdwg.mxu0
    %v223 = vadd.f32 %v167, %v217
    %v224 = vadd.f32 %v168, %v220
    %225 = vst.msk [vmem:[#allocation2] sm:$0xff] %vm178, %v223
    %226 = vst.msk [vmem:[#allocation2 + $0x8] sm:$0xff] %vm178, %v224
    // Predicated region
    $region34: #{tpu_custom_call.1} parent=1 // pred_check
      %p227 = pneg %p48
    $region35: #{tpu_custom_call.1} parent=1 // pred_check_branch
      %229 = sbr.rel (%p227) target = $region37
    $region36: #{tpu_custom_call.1} parent=1 // pred_region
      %v230 = vld [vmem:[#allocation2] sm:$0xff]
      %v231 = vld [vmem:[#allocation2 + $0x8] sm:$0xff]
      %v232 = vld [vmem:[%s4] sm:$0x1]
      %v234 = vlaneseq
      %v235 = vshrl.u32 %v234, 7
      %v236 = vsub.s32 0, %v235
      %v237 = vrot.slane %v232, %v236
      %v239 = vadd.f32 %v230, %v237
      %v240 = vadd.f32 %v231, %v237
      %v241 = vpack.c.bf16 %v240, %v239
      %v243 = vunpack.c.l.b16 %v241
      %v244 = vunpack.c.h.b16 %v241
      %v245 = vpack.c.b16 %v243, %v243
      %v246 = vpack.c.b16 %v244, %v244
      %vm249 = vcmask 257024
      %250 = vst.msk [vmem:[#allocation8] sm:$0xf] %vm249, %v245
      %251 = vst.msk [vmem:[#allocation8 + $0x4] sm:$0xf] %vm249, %v246
    $region37: #{tpu_custom_call.1} parent=1 // pred_fallthru
      _
    // Predicated region
    $region38: #{tpu_custom_call.1} parent=1 // pred_check
      _
    $region39: #{tpu_custom_call.1} parent=1 // pred_check_branch
      %253 = sbr.rel (0) target = $region41
    $region40: #{tpu_custom_call.1} parent=1 // pred_region
      %s255 = ssub.s32 128, 128
      %256 = vsyncadd [#allocation5], %s255
      %s257 = sshll.u32 [#allocation8], 4
      %s258 = int_to_ptr.vmem [resolvable:$true] %s257
      %263 = dma.vmem_to_hbm [thread:$0]  %s258, 128, %s5, [#allocation5], 64, 64, 4
    $region41: #{tpu_custom_call.1} parent=1 // pred_fallthru
      _
    // Predicated region
    $region42: #{tpu_custom_call.1} parent=1 // pred_check
      _
    $region43: #{tpu_custom_call.1} parent=1 // pred_check_branch
      %265 = sbr.rel (0) target = $region45
    $region44: #{tpu_custom_call.1} parent=1 // pred_region
      %266 = dma.done [#allocation5], 128
    $region45: #{tpu_custom_call.1} parent=1 // pred_fallthru
      _
    %267 = vsyncpa [#allocation4], 1
    %268 = vsyncpa [#allocation7], 1
    %269 = vsyncpa [#allocation5], 1

</llo_original>
